<compile_context>
chip_gen: v7x
topology: tpu7x:2x2x1
jax: 0.10.0
libtpu: 0.0.40
codegen_flags: <defaults>
</compile_context>

<pallas_src>
import jax
import jax.numpy as jnp
from jax.experimental import pallas as pl
from jax.experimental.pallas import tpu as pltpu


# ---------------------------------------------------------------------------
# Fused single-pass kernel: pool + MLP + apply over a whole (Bt, C, HW) block.
# ---------------------------------------------------------------------------
def _make_fused_kernel(hw, bt):
    inv_hw = 1.0 / float(hw)

    def kernel(x_ref, w1_ref, w2_ref, o_ref):
        # --- pooling: accumulate in f32.  HW is the true (unpadded) extent;
        # Mosaic masks the trailing partial 128-lane group in the reduces, so
        # no explicit pad / iota mask is needed.
        xp = x_ref[...]                                            # (Bt, C, HW)
        avg_f = jnp.sum(xp, axis=-1, dtype=jnp.float32) * inv_hw   # (Bt, C)
        max_f = jnp.max(xp, axis=-1).astype(jnp.float32)           # (Bt, C)

        # --- shared MLP, one stacked pass over the avg and max rows.
        pooled = jnp.concatenate([avg_f, max_f], axis=0).astype(w1_ref.dtype)
        h = jnp.dot(pooled, w1_ref[...], preferred_element_type=jnp.float32)
        h = jnp.maximum(h, 0.0)
        y = jnp.dot(h.astype(w2_ref.dtype), w2_ref[...],
                    preferred_element_type=jnp.float32)            # (2*Bt, C)
        att = jax.nn.sigmoid(y[:bt] + y[bt:])                      # (Bt, C) f32

        # --- apply.  Re-read x_ref so the big tile's live range does not span
        # the MLP (lets Mosaic interleave apply-phase vld with vst).
        o_ref[...] = (x_ref[...] * att.astype(o_ref.dtype)[:, :, None]
                      ).astype(o_ref.dtype)

    return kernel


# ---------------------------------------------------------------------------
# HW-tiled fallback: (1) pool + MLP with a reduction-last HW-chunk grid axis,
# (2) streaming apply kernel.
# ---------------------------------------------------------------------------
def _make_pool_mlp_kernel(hw_true, hw_chunk, n_chunks):
    need_mask = (hw_true % hw_chunk) != 0
    inv_hw = 1.0 / float(hw_true)

    def kernel(x_ref, w1_ref, w2_ref, att_ref, sum_acc, max_acc):
        h = pl.program_id(1)

        @pl.when(h == 0)
        def _():
            sum_acc[...] = jnp.zeros_like(sum_acc)
            max_acc[...] = jnp.full_like(max_acc, -jnp.inf)

        x = x_ref[...]                                             # (1, C, chunk)
        if need_mask:
            # Only the final chunk is ragged; mask its out-of-bounds lanes.
            lane = jax.lax.broadcasted_iota(jnp.int32, x.shape, 2)
            valid = (h * hw_chunk + lane) < hw_true
            xs = jnp.where(valid, x, 0.0)
            xm = jnp.where(valid, x, -jnp.inf)
        else:
            xs = x
            xm = x
        sum_acc[...] += jnp.sum(xs, axis=-1, dtype=jnp.float32)
        max_acc[...] = jnp.maximum(max_acc[...],
                                   jnp.max(xm, axis=-1).astype(jnp.float32))

        @pl.when(h == n_chunks - 1)
        def _():
            pooled = jnp.concatenate([sum_acc[...] * inv_hw, max_acc[...]],
                                     axis=0).astype(w1_ref.dtype)  # (2, C)
            hid = jnp.maximum(
                jnp.dot(pooled, w1_ref[...],
                        preferred_element_type=jnp.float32), 0.0)
            y = jnp.dot(hid.astype(w2_ref.dtype), w2_ref[...],
                        preferred_element_type=jnp.float32)        # (2, C)
            att_ref[...] = jax.nn.sigmoid(y[:1] + y[1:])[:, :, None]

    return kernel


def _apply_kernel(x_ref, att_ref, o_ref):
    att = att_ref[...].astype(o_ref.dtype)                         # (1, C, 1)
    o_ref[...] = (x_ref[...] * att).astype(o_ref.dtype)


# ---------------------------------------------------------------------------
# Wrappers
# ---------------------------------------------------------------------------
def _pick_bt(B, per_b_bytes, target_bytes):
    divisors = [d for d in range(1, B + 1) if B % d == 0]
    fitting = [d for d in divisors if d * per_b_bytes <= target_bytes]
    return max(fitting) if fitting else 1


def _fused_path(x_flat, w1, w2, *, target_block_bytes):
    B, C, HW = x_flat.shape
    Cr = w1.shape[1]
    itemsize = jnp.dtype(x_flat.dtype).itemsize
    per_b_bytes = C * HW * itemsize

    # Bigger blocks amortize the ~0.35us per-step overhead; single-TC chips
    # (v5e/v6e) gain nothing from extra grid steps, so no Bt-halving here.
    bt = _pick_bt(B, per_b_bytes, target_block_bytes)
    grid = (B // bt,)

    w_bytes = w1.size * w1.dtype.itemsize + w2.size * w2.dtype.itemsize
    block_bytes = bt * per_b_bytes
    # Budget against v7x's 64 MiB/TC VMEM: double-buffered in + out blocks,
    # weights, headroom for the small f32 temporaries.
    vmem_bytes = int(min(max(4 * block_bytes + 2 * w_bytes + (4 << 20),
                             16 << 20), 40 << 20))
    cost = pl.CostEstimate(
        flops=int(3 * B * C * HW + 2 * 2 * (2 * B) * C * Cr),
        transcendentals=int(B * C),
        bytes_accessed=int(2 * B * C * HW * itemsize + w_bytes),
    )
    return pl.pallas_call(
        _make_fused_kernel(HW, bt),
        out_shape=jax.ShapeDtypeStruct((B, C, HW), x_flat.dtype),
        grid_spec=pltpu.PrefetchScalarGridSpec(
            num_scalar_prefetch=0,
            grid=grid,
            in_specs=[
                pl.BlockSpec((bt, C, HW), lambda b: (b, 0, 0)),
                pl.BlockSpec(w1.shape, lambda b: (0, 0)),
                pl.BlockSpec(w2.shape, lambda b: (0, 0)),
            ],
            out_specs=pl.BlockSpec((bt, C, HW), lambda b: (b, 0, 0)),
        ),
        compiler_params=pltpu.CompilerParams(
            dimension_semantics=("parallel",),
            vmem_limit_bytes=vmem_bytes),
        cost_estimate=cost,
    )(x_flat, w1, w2)


def _tiled_path(x_flat, w1, w2, *, hw_chunk_bytes):
    B, C, HW = x_flat.shape
    Cr = w1.shape[1]
    itemsize = jnp.dtype(x_flat.dtype).itemsize

    # Lane-dense chunk (multiple of 128) targeting ~hw_chunk_bytes per block.
    lanes = max(128, (hw_chunk_bytes // max(C * itemsize, 1)) // 128 * 128)
    hw_chunk = int(min(lanes, ((HW + 127) // 128) * 128))
    if hw_chunk >= HW:
        hw_chunk = HW
    n_chunks = pl.cdiv(HW, hw_chunk)

    w_bytes = w1.size * w1.dtype.itemsize + w2.size * w2.dtype.itemsize
    block_bytes = C * hw_chunk * itemsize
    vmem_bytes = int(min(max(4 * block_bytes + 2 * w_bytes + (4 << 20),
                             16 << 20), 40 << 20))

    att = pl.pallas_call(
        _make_pool_mlp_kernel(HW, hw_chunk, n_chunks),
        out_shape=jax.ShapeDtypeStruct((B, C, 1), jnp.float32),
        grid_spec=pltpu.PrefetchScalarGridSpec(
            num_scalar_prefetch=0,
            grid=(B, n_chunks),
            in_specs=[
                pl.BlockSpec((1, C, hw_chunk), lambda b, h: (b, 0, h)),
                pl.BlockSpec(w1.shape, lambda b, h: (0, 0)),
                pl.BlockSpec(w2.shape, lambda b, h: (0, 0)),
            ],
            out_specs=pl.BlockSpec((1, C, 1), lambda b, h: (b, 0, 0)),
            scratch_shapes=[pltpu.VMEM((1, C), jnp.float32),
                            pltpu.VMEM((1, C), jnp.float32)],
        ),
        compiler_params=pltpu.CompilerParams(
            dimension_semantics=("parallel", "arbitrary"),
            vmem_limit_bytes=vmem_bytes),
        cost_estimate=pl.CostEstimate(
            flops=int(2 * B * C * HW + 2 * 2 * (2 * B) * C * Cr),
            transcendentals=int(B * C),
            bytes_accessed=int(B * C * HW * itemsize + w_bytes),
        ),
    )(x_flat, w1, w2)

    out = pl.pallas_call(
        _apply_kernel,
        out_shape=jax.ShapeDtypeStruct((B, C, HW), x_flat.dtype),
        grid_spec=pltpu.PrefetchScalarGridSpec(
            num_scalar_prefetch=0,
            grid=(B, n_chunks),
            in_specs=[
                pl.BlockSpec((1, C, hw_chunk), lambda b, h: (b, 0, h)),
                pl.BlockSpec((1, C, 1), lambda b, h: (b, 0, 0)),
            ],
            out_specs=pl.BlockSpec((1, C, hw_chunk), lambda b, h: (b, 0, h)),
        ),
        compiler_params=pltpu.CompilerParams(
            dimension_semantics=("parallel", "parallel"),
            vmem_limit_bytes=vmem_bytes),
        cost_estimate=pl.CostEstimate(
            flops=int(B * C * HW),
            transcendentals=0,
            bytes_accessed=int(2 * B * C * HW * itemsize),
        ),
    )(x_flat, att)
    return out


def channel_attention(x, w1_conv, w2_conv, *,
                      target_block_bytes=4 << 20,
                      max_fused_block_bytes=8 << 20,
                      hw_chunk_bytes=2 << 20):
    """CBAM channel-attention forward.

    x:       (B, C, H, W)  (NCHW, same as PyTorch).
    w1_conv: (C//r, C)  -- first 1x1 conv weight (out, in), no bias.
    w2_conv: (C, C//r)  -- second 1x1 conv weight (out, in), no bias.
    Returns (B, C, H, W).
    """
    B, C, H, W = x.shape
    HW = H * W
    itemsize = jnp.dtype(x.dtype).itemsize

    # Keep the MLP in bf16 when x is bf16 (native MXU dtype); otherwise f32.
    w_dtype = jnp.bfloat16 if x.dtype == jnp.bfloat16 else jnp.float32
    w1 = w1_conv.T.astype(w_dtype)   # (C, Cr)
    w2 = w2_conv.T.astype(w_dtype)   # (Cr, C)

    x_flat = x.reshape(B, C, HW)     # contiguous reshape, no HBM copy
    per_b_bytes = C * HW * itemsize

    if per_b_bytes <= max_fused_block_bytes:
        out_flat = _fused_path(x_flat, w1, w2,
                               target_block_bytes=target_block_bytes)
    else:
        out_flat = _tiled_path(x_flat, w1, w2, hw_chunk_bytes=hw_chunk_bytes)
    return out_flat.reshape(B, C, H, W)


def channel_attention_ref(x, w1_conv, w2_conv):
    # Pure-JAX reference mirroring the PyTorch forward.
    avg = jnp.mean(x, axis=(2, 3))                 # (B, C)
    mx = jnp.max(x, axis=(2, 3))                   # (B, C)

    def mapping(f):
        h = jnp.maximum(f @ w1_conv.T, 0.0)
        return h @ w2_conv.T

    att = jax.nn.sigmoid(mapping(avg) + mapping(mx))   # (B, C)
    return x * att[:, :, None, None]


if __name__ == "__main__":
    key = jax.random.PRNGKey(0)
    kx, kw1, kw2, kx2, kx3 = jax.random.split(key, 5)

    # Shapes consistent with the module: num_plane=32, reduction=4 -> hidden=8.
    B, C = 2, 32
    reduction = 4
    Cr = C // reduction

    w1_conv = jax.random.normal(kw1, (Cr, C), dtype=jnp.float32) * (1.0 / jnp.sqrt(C))
    w2_conv = jax.random.normal(kw2, (C, Cr), dtype=jnp.float32) * (1.0 / jnp.sqrt(Cr))

    # 1) 16x16 spatial (HW multiple of 128) -> fused path.
    x = jax.random.normal(kx, (B, C, 16, 16), dtype=jnp.float32)
    out = jax.block_until_ready(channel_attention(x, w1_conv, w2_conv))
    ref = channel_attention_ref(x, w1_conv, w2_conv)
    assert out.shape == x.shape
    assert jnp.allclose(out, ref, atol=1e-5, rtol=1e-5), "mismatch (16x16)"

    # 2) 7x7 spatial (HW=49, not a multiple of 128) -> fused path; no wrapper
    #    pad/slice, Mosaic masks the partial lane group in the reduces/store.
    x2 = jax.random.normal(kx2, (B, C, 7, 7), dtype=jnp.float32) - 1.0
    out2 = jax.block_until_ready(channel_attention(x2, w1_conv, w2_conv))
    ref2 = channel_attention_ref(x2, w1_conv, w2_conv)
    assert jnp.allclose(out2, ref2, atol=1e-5, rtol=1e-5), "mismatch (7x7)"

    # 3) Force the HW-tiled two-kernel fallback (large feature-map path) on a
    #    small shape, including a ragged last chunk (HW=144, chunk=128).
    x3 = jax.random.normal(kx3, (B, C, 12, 12), dtype=jnp.float32) - 0.5
    out3 = jax.block_until_ready(
        channel_attention(x3, w1_conv, w2_conv,
                          max_fused_block_bytes=0, hw_chunk_bytes=1))
    ref3 = channel_attention_ref(x3, w1_conv, w2_conv)
    assert jnp.allclose(out3, ref3, atol=1e-5, rtol=1e-5), "mismatch (tiled)"

    print("KERNEL_OK")
</pallas_src>

<mosaic_0001>
module attributes {stable_mosaic.version = 11 : i64} {
  func.func @kernel(%arg0: i32, %arg1: memref<2x32x256xf32, #tpu.memory_space<vmem>>, %arg2: memref<32x8xf32, #tpu.memory_space<vmem>>, %arg3: memref<8x32xf32, #tpu.memory_space<vmem>>, %arg4: memref<2x32x256xf32, #tpu.memory_space<vmem>>) attributes {dimension_semantics = [#tpu.dimension_semantics<parallel>], iteration_bounds = array<i64: 1>, scalar_prefetch = 0 : i64, scratch_operands = 0 : i64, tpu.core_type = #tpu.core_type<tc>, window_params = [{transform_indices = @transform_0, window_bounds = array<i64: 2, 32, 256>}, {pipeline_mode = #tpu.pipeline_mode<synchronous>, transform_indices = @transform_1, window_bounds = array<i64: 32, 8>}, {pipeline_mode = #tpu.pipeline_mode<synchronous>, transform_indices = @transform_2, window_bounds = array<i64: 8, 32>}, {transform_indices = @transform_3, window_bounds = array<i64: 2, 32, 256>}]} {
    %c0 = arith.constant 0 : index
    %c0_0 = arith.constant 0 : index
    %c0_1 = arith.constant 0 : index
    %0 = vector.load %arg1[%c0, %c0_0, %c0_1] : memref<2x32x256xf32, #tpu.memory_space<vmem>>, vector<2x32x256xf32>
    %cst = arith.constant dense<0.000000e+00> : vector<2x32xf32>
    %1 = vector.multi_reduction <add>, %0, %cst [2] : vector<2x32x256xf32> to vector<2x32xf32>
    %cst_2 = arith.constant 3.906250e-03 : f32
    %2 = vector.broadcast %cst_2 : f32 to vector<2x32xf32>
    %3 = arith.mulf %1, %2 : vector<2x32xf32>
    %cst_3 = arith.constant dense<0xFF800000> : vector<2x32xf32>
    %4 = vector.multi_reduction <maximumf>, %0, %cst_3 [2] : vector<2x32x256xf32> to vector<2x32xf32>
    %5 = tpu.concatenate %3, %4 in 0 : vector<2x32xf32>, vector<2x32xf32> -> vector<4x32xf32>
    %c0_4 = arith.constant 0 : index
    %c0_5 = arith.constant 0 : index
    %6 = vector.load %arg2[%c0_4, %c0_5] : memref<32x8xf32, #tpu.memory_space<vmem>>, vector<32x8xf32>
    %cst_6 = arith.constant dense<0.000000e+00> : vector<4x8xf32>
    %7 = tpu.matmul %5, %6, %cst_6 {dimension_numbers = #tpu.dot_dimension_numbers<[1], [0], [0], [1], [0, 0, 1, 1], [], []>} : vector<4x32xf32>, vector<32x8xf32>, vector<4x8xf32> -> vector<4x8xf32>
    %cst_7 = arith.constant 0.000000e+00 : f32
    %8 = vector.broadcast %cst_7 : f32 to vector<4x8xf32>
    %9 = arith.maximumf %7, %8 : vector<4x8xf32>
    %c0_8 = arith.constant 0 : index
    %c0_9 = arith.constant 0 : index
    %10 = vector.load %arg3[%c0_8, %c0_9] : memref<8x32xf32, #tpu.memory_space<vmem>>, vector<8x32xf32>
    %cst_10 = arith.constant dense<0.000000e+00> : vector<4x32xf32>
    %11 = tpu.matmul %9, %10, %cst_10 {dimension_numbers = #tpu.dot_dimension_numbers<[1], [0], [0], [1], [0, 0, 1, 1], [], []>} : vector<4x8xf32>, vector<8x32xf32>, vector<4x32xf32> -> vector<4x32xf32>
    %12 = vector.extract_strided_slice %11 {offsets = [0, 0], sizes = [2, 32], strides = [1, 1]} : vector<4x32xf32> to vector<2x32xf32>
    %13 = vector.extract_strided_slice %11 {offsets = [2, 0], sizes = [2, 32], strides = [1, 1]} : vector<4x32xf32> to vector<2x32xf32>
    %14 = arith.addf %12, %13 : vector<2x32xf32>
    %15 = arith.negf %14 : vector<2x32xf32>
    %16 = math.exp %15 : vector<2x32xf32>
    %cst_11 = arith.constant 1.000000e+00 : f32
    %17 = vector.broadcast %cst_11 : f32 to vector<2x32xf32>
    %18 = arith.addf %17, %16 : vector<2x32xf32>
    %19 = arith.divf %17, %18 : vector<2x32xf32>
    %c0_12 = arith.constant 0 : index
    %c0_13 = arith.constant 0 : index
    %c0_14 = arith.constant 0 : index
    %20 = vector.load %arg1[%c0_12, %c0_13, %c0_14] : memref<2x32x256xf32, #tpu.memory_space<vmem>>, vector<2x32x256xf32>
    %21 = vector.shape_cast %19 : vector<2x32xf32> to vector<2x32x1xf32>
    %22 = vector.broadcast %21 : vector<2x32x1xf32> to vector<2x32x256xf32>
    %23 = arith.mulf %20, %22 : vector<2x32x256xf32>
    %c0_15 = arith.constant 0 : index
    %c0_16 = arith.constant 0 : index
    %c0_17 = arith.constant 0 : index
    %24 = vector.load %arg4[%c0_15, %c0_16, %c0_17] : memref<2x32x256xf32, #tpu.memory_space<vmem>>, vector<2x32x256xf32>
    tpu.vector_store %arg4[%c0_15, %c0_16, %c0_17], %23 {strides = array<i32>} : memref<2x32x256xf32, #tpu.memory_space<vmem>>, vector<2x32x256xf32>,
    return
  }
  func.func @transform_0(%arg0: i32) -> (i32, i32, i32) {
    %c0_i32 = arith.constant 0 : i32
    %c0_i32_0 = arith.constant 0 : i32
    %c0_i32_1 = arith.constant 0 : i32
    return %arg0, %c0_i32, %c0_i32_0 : i32, i32, i32
  }
  func.func @transform_1(%arg0: i32) -> (i32, i32) {
    %c0_i32 = arith.constant 0 : i32
    %c0_i32_0 = arith.constant 0 : i32
    %c0_i32_1 = arith.constant 0 : i32
    return %c0_i32, %c0_i32_0 : i32, i32
  }
  func.func @transform_2(%arg0: i32) -> (i32, i32) {
    %c0_i32 = arith.constant 0 : i32
    %c0_i32_0 = arith.constant 0 : i32
    %c0_i32_1 = arith.constant 0 : i32
    return %c0_i32, %c0_i32_0 : i32, i32
  }
  func.func @transform_3(%arg0: i32) -> (i32, i32, i32) {
    %c0_i32 = arith.constant 0 : i32
    %c0_i32_0 = arith.constant 0 : i32
    %c0_i32_1 = arith.constant 0 : i32
    return %arg0, %c0_i32, %c0_i32_0 : i32, i32, i32
  }
}

</mosaic_0001>

<llo_original>
// kernel: tpu_custom_call.1
$region0: #{tpu_custom_call.1}
  #allocation0 [shape = 'u32[]', space=smem, size = 0x4, offset = 0x4, fixed_abs, tag = 'smem constant byte address 0x4 - core index']
  #allocation1 [shape = 'u32[144,128]{1,0:T(1,128)}', space=vmem, size = 0x12000, scoped, tag = 'internal scratch']
  %s0 = inlined_call_operand.hbm [shape: f32[2,32,256], index: 0, kind: input, shape index: {}]
  %s1 = inlined_call_operand.vmem [shape: f32[32,8], index: 1, kind: input, shape index: {}]
  %s2 = inlined_call_operand.vmem [shape: f32[8,32], index: 2, kind: input, shape index: {}]
  %s3 = inlined_call_operand.hbm [shape: f32[2,32,256], index: 3, kind: output, shape index: {}]
  %s4 = sld [smem:[#allocation0]]
  $region26: #{tpu_custom_call.1} parent=0
    _
  %s6 = ssub.s32 1, %s4
  %s7 = scalar_select 0, %s6, %s4
  $region1: #{tpu_custom_call.1} parent=0
    #allocation2 [shape = 'u8[65536]{0}', space=vmem, size = 0x10000, scoped, tag = 'input window, operand 0, single buffered']
    #allocation3 [shape = 's32[1]{0}', space=sflag, size = 0x4, scoped, tag = 'scoped memory for tpu_custom_call.1']
    #allocation4 [shape = 's32[1]{0}', space=sflag, size = 0x4, scoped, tag = 'scoped memory for tpu_custom_call.1']
    #allocation5 [shape = 'u8[65536]{0}', space=vmem, size = 0x10000, scoped, tag = 'output window, operand 0, single buffered']
    %8 = vsyncpa [#allocation3], 0
    %9 = vsyncpa [#allocation4], 0
    // Predicated region
    $region2: #{tpu_custom_call.1} parent=1 // pred_check
      _
    $region3: #{tpu_custom_call.1} parent=1 // pred_check_branch
      %11 = sbr.rel (0) target = $region5
    $region4: #{tpu_custom_call.1} parent=1 // pred_region
      %s13 = ssub.s32 2048, 2048
      %14 = vsyncadd [#allocation3], %s13
      %s15 = sshll.u32 [#allocation2], 4
      %s16 = int_to_ptr.vmem [resolvable:$true] %s15
      %21 = dma.hbm_to_vmem [thread:$0]  %s0, 2048, %s16, [#allocation3], 256, 256, 16
    $region5: #{tpu_custom_call.1} parent=1 // pred_fallthru
      _
    // Predicated region
    $region6: #{tpu_custom_call.1} parent=1 // pred_check
      _
    $region7: #{tpu_custom_call.1} parent=1 // pred_check_branch
      %23 = sbr.rel (0) target = $region9
    $region8: #{tpu_custom_call.1} parent=1 // pred_region
      _
    $region9: #{tpu_custom_call.1} parent=1 // pred_fallthru
      _
    // Predicated region
    $region10: #{tpu_custom_call.1} parent=1 // pred_check
      _
    $region11: #{tpu_custom_call.1} parent=1 // pred_check_branch
      %25 = sbr.rel (0) target = $region13
    $region12: #{tpu_custom_call.1} parent=1 // pred_region
      _
    $region13: #{tpu_custom_call.1} parent=1 // pred_fallthru
      _
    // Predicated region
    $region14: #{tpu_custom_call.1} parent=1 // pred_check
      _
    $region15: #{tpu_custom_call.1} parent=1 // pred_check_branch
      %27 = sbr.rel (0) target = $region17
    $region16: #{tpu_custom_call.1} parent=1 // pred_region
      %28 = dma.done [#allocation3], 2048
    $region17: #{tpu_custom_call.1} parent=1 // pred_fallthru
      _
    %v29 = vld [vmem:[#allocation2] sm:$0xff]
    %v30 = vld [vmem:[#allocation2 + $0x8] sm:$0xff]
    %v31 = vld [vmem:[#allocation2 + $0x10] sm:$0xff]
    %v32 = vld [vmem:[#allocation2 + $0x18] sm:$0xff]
    %v33 = vld [vmem:[#allocation2 + $0x20] sm:$0xff]
    %v34 = vld [vmem:[#allocation2 + $0x28] sm:$0xff]
    %v35 = vld [vmem:[#allocation2 + $0x30] sm:$0xff]
    %v36 = vld [vmem:[#allocation2 + $0x38] sm:$0xff]
    %v37 = vld [vmem:[#allocation2 + $0x40] sm:$0xff]
    %v38 = vld [vmem:[#allocation2 + $0x48] sm:$0xff]
    %v39 = vld [vmem:[#allocation2 + $0x50] sm:$0xff]
    %v40 = vld [vmem:[#allocation2 + $0x58] sm:$0xff]
    %v41 = vld [vmem:[#allocation2 + $0x60] sm:$0xff]
    %v42 = vld [vmem:[#allocation2 + $0x68] sm:$0xff]
    %v43 = vld [vmem:[#allocation2 + $0x70] sm:$0xff]
    %v44 = vld [vmem:[#allocation2 + $0x78] sm:$0xff]
    %v45 = vadd.f32 %v29, %v30
    %46 = vadd.xlane.f32.xlu0 %v45
    %v47 = vpop.xlane.xlu0 %46
    %v48 = vadd.f32 %v31, %v32
    %49 = vadd.xlane.f32.xlu0 %v48
    %v50 = vpop.xlane.xlu0 %49
    %v51 = vadd.f32 %v33, %v34
    %52 = vadd.xlane.f32.xlu0 %v51
    %v53 = vpop.xlane.xlu0 %52
    %v54 = vadd.f32 %v35, %v36
    %55 = vadd.xlane.f32.xlu0 %v54
    %v56 = vpop.xlane.xlu0 %55
    %v57 = vadd.f32 %v37, %v38
    %58 = vadd.xlane.f32.xlu0 %v57
    %v59 = vpop.xlane.xlu0 %58
    %v60 = vadd.f32 %v39, %v40
    %61 = vadd.xlane.f32.xlu0 %v60
    %v62 = vpop.xlane.xlu0 %61
    %v63 = vadd.f32 %v41, %v42
    %64 = vadd.xlane.f32.xlu0 %v63
    %v65 = vpop.xlane.xlu0 %64
    %v66 = vadd.f32 %v43, %v44
    %67 = vadd.xlane.f32.xlu0 %v66
    %v68 = vpop.xlane.xlu0 %67
    %v69 = vmul.f32 %v47, 0.00390625
    %v70 = vmul.f32 %v50, 0.00390625
    %v71 = vmul.f32 %v53, 0.00390625
    %v72 = vmul.f32 %v56, 0.00390625
    %v73 = vmul.f32 %v59, 0.00390625
    %v74 = vmul.f32 %v62, 0.00390625
    %v75 = vmul.f32 %v65, 0.00390625
    %v76 = vmul.f32 %v68, 0.00390625
    %v77 = vmax.f32 %v29, %v30
    %78 = vmax.xlane.f32.xlu0 %v77
    %v79 = vpop.xlane.xlu0 %78
    %v80 = vmax.f32 %v31, %v32
    %81 = vmax.xlane.f32.xlu0 %v80
    %v82 = vpop.xlane.xlu0 %81
    %v83 = vmax.f32 %v33, %v34
    %84 = vmax.xlane.f32.xlu0 %v83
    %v85 = vpop.xlane.xlu0 %84
    %v86 = vmax.f32 %v35, %v36
    %87 = vmax.xlane.f32.xlu0 %v86
    %v88 = vpop.xlane.xlu0 %87
    %v89 = vmax.f32 %v37, %v38
    %90 = vmax.xlane.f32.xlu0 %v89
    %v91 = vpop.xlane.xlu0 %90
    %v92 = vmax.f32 %v39, %v40
    %93 = vmax.xlane.f32.xlu0 %v92
    %v94 = vpop.xlane.xlu0 %93
    %v95 = vmax.f32 %v41, %v42
    %96 = vmax.xlane.f32.xlu0 %v95
    %v97 = vpop.xlane.xlu0 %96
    %v98 = vmax.f32 %v43, %v44
    %99 = vmax.xlane.f32.xlu0 %v98
    %v100 = vpop.xlane.xlu0 %99
    %v109 = vlaneseq
    %v110 = vand.u32 %v109, 127
    %v111 = vlaneseq
    %v112 = vshrl.u32 %v111, 7
    %v113 = vsub.s32 %v110, %v112
    %v114 = vrot.slane %v69, %v113
    %v115 = vadd.s32 %v110, 4294967288
    %v116 = vlaneseq
    %v117 = vshrl.u32 %v116, 7
    %v118 = vsub.s32 %v115, %v117
    %v119 = vrot.slane %v70, %v118
    %vm120 = vcmask 130112
    %v121 = vsel %vm120, %v119, %v114
    %v122 = vadd.s32 %v110, 4294967280
    %v123 = vlaneseq
    %v124 = vshrl.u32 %v123, 7
    %v125 = vsub.s32 %v122, %v124
    %v126 = vrot.slane %v71, %v125
    %vm127 = vcmask 195712
    %v128 = vsel %vm127, %v126, %v121
    %v129 = vadd.s32 %v110, 4294967272
    %v130 = vlaneseq
    %v131 = vshrl.u32 %v130, 7
    %v132 = vsub.s32 %v129, %v131
    %v133 = vrot.slane %v72, %v132
    %vm134 = vcmask 261312
    %v135 = vsel %vm134, %v133, %v128
    %v136 = vlaneseq
    %v137 = vshrl.u32 %v136, 7
    %v138 = vsub.s32 %v110, %v137
    %v139 = vrot.slane %v73, %v138
    %v140 = vlaneseq
    %v141 = vshrl.u32 %v140, 7
    %v142 = vsub.s32 %v115, %v141
    %v143 = vrot.slane %v74, %v142
    %v144 = vsel %vm120, %v143, %v139
    %v145 = vlaneseq
    %v146 = vshrl.u32 %v145, 7
    %v147 = vsub.s32 %v122, %v146
    %v148 = vrot.slane %v75, %v147
    %v149 = vsel %vm127, %v148, %v144
    %v150 = vlaneseq
    %v151 = vshrl.u32 %v150, 7
    %v152 = vsub.s32 %v129, %v151
    %v153 = vrot.slane %v76, %v152
    %v154 = vsel %vm134, %v153, %v149
    %vm155 = vcmask 1041409
    %v156 = vsel %vm155, %v154, %v135
    %v166 = vlaneseq
    %v167 = vshrl.u32 %v166, 7
    %v168 = vsub.s32 %v110, %v167
    %v169 = vrot.slane %v79, %v168
    %v170 = vlaneseq
    %v171 = vshrl.u32 %v170, 7
    %v172 = vsub.s32 %v115, %v171
    %v173 = vrot.slane %v82, %v172
    %v174 = vsel %vm120, %v173, %v169
    %v175 = vlaneseq
    %v176 = vshrl.u32 %v175, 7
    %v177 = vsub.s32 %v122, %v176
    %v178 = vrot.slane %v85, %v177
    %v179 = vsel %vm127, %v178, %v174
    %v180 = vlaneseq
    %v181 = vshrl.u32 %v180, 7
    %v182 = vsub.s32 %v129, %v181
    %v183 = vrot.slane %v88, %v182
    %v184 = vsel %vm134, %v183, %v179
    %v185 = vlaneseq
    %v186 = vshrl.u32 %v185, 7
    %v187 = vsub.s32 %v110, %v186
    %v188 = vrot.slane %v91, %v187
    %v189 = vlaneseq
    %v190 = vshrl.u32 %v189, 7
    %v191 = vsub.s32 %v115, %v190
    %v192 = vrot.slane %v94, %v191
    %v193 = vsel %vm120, %v192, %v188
    %v194 = vlaneseq
    %v195 = vshrl.u32 %v194, 7
    %v196 = vsub.s32 %v122, %v195
    %v197 = vrot.slane %v97, %v196
    %v198 = vsel %vm127, %v197, %v193
    %v199 = vlaneseq
    %v200 = vshrl.u32 %v199, 7
    %v201 = vsub.s32 %v129, %v200
    %v202 = vrot.slane %v100, %v201
    %v203 = vsel %vm134, %v202, %v198
    %vm204 = vcmask 1043459
    %v205 = vsel %vm204, %v203, %v184
    %vm207 = vcmask 1041408
    %v208 = vsel %vm207, %v156, %v205
    %v209 = vld [vmem:[%s1] sm:$0xff]
    %v210 = vld [vmem:[%s1 + $0x8] sm:$0xff]
    %v211 = vld [vmem:[%s1 + $0x10] sm:$0xff]
    %v212 = vld [vmem:[%s1 + $0x18] sm:$0xff]
    %vm213 = vcmask 261120
    %v215 = vsel %vm213, %v208, 0
    %217 = vmatprep.subr.mxu0 0.0
    %218 = vmatpush1.msra.mxu0 %v209
    %219 = vmatprep.subr.mxu0 0.0
    %220 = vmatpush1.msra.mxu0 %v210
    %221 = vmatprep.subr.mxu0 0.0
    %222 = vmatpush1.msra.mxu0 %v211
    %223 = vmatprep.subr.mxu0 0.0
    %224 = vmatpush1.msra.mxu0 %v212
    %225 = vmatprep.subr.mxu0 0.0
    %226 = vmatpush1.msra.mxu0 0.0
    %227 = vmatprep.subr.mxu0 0.0
    %228 = vmatpush1.msra.mxu0 0.0
    %229 = vmatprep.subr.mxu0 0.0
    %230 = vmatpush1.msra.mxu0 0.0
    %231 = vmatprep.subr.mxu0 0.0
    %232 = vmatpush1.msra.mxu0 0.0
    %233 = vmatprep.subr.mxu0 0.0
    %234 = vmatpush1.msra.mxu0 0.0
    %235 = vmatprep.subr.mxu0 0.0
    %236 = vmatpush1.msra.mxu0 0.0
    %237 = vmatprep.subr.mxu0 0.0
    %238 = vmatpush1.msra.mxu0 0.0
    %239 = vmatprep.subr.mxu0 0.0
    %240 = vmatpush1.msra.mxu0 0.0
    %241 = vmatprep.subr.mxu0 0.0
    %242 = vmatpush1.msra.mxu0 0.0
    %243 = vmatprep.subr.mxu0 0.0
    %244 = vmatpush1.msra.mxu0 0.0
    %245 = vmatprep.subr.mxu0 0.0
    %246 = vmatpush1.msra.mxu0 0.0
    %247 = vmatprep.subr.mxu0 0.0
    %248 = vmatpush1.msra.mxu0 0.0
    %249 = vmatprep.subr.mxu0 0.0
    %250 = vmatpush1.msra.mxu0 0.0
    %251 = vmatprep.subr.mxu0 0.0
    %252 = vmatpush1.msra.mxu0 0.0
    %253 = vmatprep.subr.mxu0 0.0
    %254 = vmatpush1.msra.mxu0 0.0
    %255 = vmatprep.subr.mxu0 0.0
    %256 = vmatpush1.msra.mxu0 0.0
    %257 = vmatprep.subr.mxu0 0.0
    %258 = vmatpush1.msra.mxu0 0.0
    %259 = vmatprep.subr.mxu0 0.0
    %260 = vmatpush1.msra.mxu0 0.0
    %261 = vmatprep.subr.mxu0 0.0
    %262 = vmatpush1.msra.mxu0 0.0
    %263 = vmatprep.subr.mxu0 0.0
    %264 = vmatpush1.msra.mxu0 0.0
    %265 = vmatprep.subr.mxu0 0.0
    %266 = vmatpush1.msra.mxu0 0.0
    %267 = vmatprep.subr.mxu0 0.0
    %268 = vmatpush1.msra.mxu0 0.0
    %269 = vmatprep.subr.mxu0 0.0
    %270 = vmatpush1.msra.mxu0 0.0
    %271 = vmatprep.subr.mxu0 0.0
    %272 = vmatpush1.msra.mxu0 0.0
    %273 = vmatprep.subr.mxu0 0.0
    %274 = vmatpush1.msra.mxu0 0.0
    %275 = vmatprep.subr.mxu0 0.0
    %276 = vmatpush1.msra.mxu0 0.0
    %277 = vmatprep.subr.mxu0 0.0
    %278 = vmatpush1.msra.mxu0 0.0
    %279 = vmatprep.subr.mxu0 0.0
    %280 = vmatpush1.msra.mxu0 0.0
    %281 = vmatprep.mubr.f32.mxu0 0.0
    %282 = vmatmul.mubr.f32.gmra.mrb[0].mxu0 %v215
    %v283 = vpop.f32.mrb[0].mxu0
    %v284 = vadd.f32 0.0, %v283
    %v285 = vpop.f32.mrb[0].mxu0
    %286 = vdwg.mxu0
    %v287 = vmax.f32 %v284, 0.0
    %v288 = vld [vmem:[%s2] sm:$0xff]
    %vm289 = vcmask 64512
    %v291 = vsel %vm289, %v287, 0
    %293 = vmatprep.subr.mxu0 0.0
    %294 = vmatpush1.msra.mxu0 %v288
    %295 = vmatprep.subr.mxu0 0.0
    %296 = vmatpush1.msra.mxu0 0.0
    %297 = vmatprep.subr.mxu0 0.0
    %298 = vmatpush1.msra.mxu0 0.0
    %299 = vmatprep.subr.mxu0 0.0
    %300 = vmatpush1.msra.mxu0 0.0
    %301 = vmatprep.subr.mxu0 0.0
    %302 = vmatpush1.msra.mxu0 0.0
    %303 = vmatprep.subr.mxu0 0.0
    %304 = vmatpush1.msra.mxu0 0.0
    %305 = vmatprep.subr.mxu0 0.0
    %306 = vmatpush1.msra.mxu0 0.0
    %307 = vmatprep.subr.mxu0 0.0
    %308 = vmatpush1.msra.mxu0 0.0
    %309 = vmatprep.subr.mxu0 0.0
    %310 = vmatpush1.msra.mxu0 0.0
    %311 = vmatprep.subr.mxu0 0.0
    %312 = vmatpush1.msra.mxu0 0.0
    %313 = vmatprep.subr.mxu0 0.0
    %314 = vmatpush1.msra.mxu0 0.0
    %315 = vmatprep.subr.mxu0 0.0
    %316 = vmatpush1.msra.mxu0 0.0
    %317 = vmatprep.subr.mxu0 0.0
    %318 = vmatpush1.msra.mxu0 0.0
    %319 = vmatprep.subr.mxu0 0.0
    %320 = vmatpush1.msra.mxu0 0.0
    %321 = vmatprep.subr.mxu0 0.0
    %322 = vmatpush1.msra.mxu0 0.0
    %323 = vmatprep.subr.mxu0 0.0
    %324 = vmatpush1.msra.mxu0 0.0
    %325 = vmatprep.subr.mxu0 0.0
    %326 = vmatpush1.msra.mxu0 0.0
    %327 = vmatprep.subr.mxu0 0.0
    %328 = vmatpush1.msra.mxu0 0.0
    %329 = vmatprep.subr.mxu0 0.0
    %330 = vmatpush1.msra.mxu0 0.0
    %331 = vmatprep.subr.mxu0 0.0
    %332 = vmatpush1.msra.mxu0 0.0
    %333 = vmatprep.subr.mxu0 0.0
    %334 = vmatpush1.msra.mxu0 0.0
    %335 = vmatprep.subr.mxu0 0.0
    %336 = vmatpush1.msra.mxu0 0.0
    %337 = vmatprep.subr.mxu0 0.0
    %338 = vmatpush1.msra.mxu0 0.0
    %339 = vmatprep.subr.mxu0 0.0
    %340 = vmatpush1.msra.mxu0 0.0
    %341 = vmatprep.subr.mxu0 0.0
    %342 = vmatpush1.msra.mxu0 0.0
    %343 = vmatprep.subr.mxu0 0.0
    %344 = vmatpush1.msra.mxu0 0.0
    %345 = vmatprep.subr.mxu0 0.0
    %346 = vmatpush1.msra.mxu0 0.0
    %347 = vmatprep.subr.mxu0 0.0
    %348 = vmatpush1.msra.mxu0 0.0
    %349 = vmatprep.subr.mxu0 0.0
    %350 = vmatpush1.msra.mxu0 0.0
    %351 = vmatprep.subr.mxu0 0.0
    %352 = vmatpush1.msra.mxu0 0.0
    %353 = vmatprep.subr.mxu0 0.0
    %354 = vmatpush1.msra.mxu0 0.0
    %355 = vmatprep.subr.mxu0 0.0
    %356 = vmatpush1.msra.mxu0 0.0
    %357 = vmatprep.mubr.f32.mxu0 0.0
    %358 = vmatmul.mubr.f32.gmra.mrb[0].mxu0 %v291
    %v359 = vpop.f32.mrb[0].mxu0
    %v360 = vadd.f32 0.0, %v359
    %v361 = vpop.f32.mrb[0].mxu0
    %362 = vdwg.mxu0
    %v364 = vrot.slane %v360, 2
    %v366 = vadd.f32 %v360, %v364
    %v367 = vxor.u32 %v366, 2147483648
    %v368 = vmul.f32 %v367, 1.442695
    %v369 = vpow.pop %v368
    %v370 = vadd.f32 %v369, 1.0
    %v371 = vrcp.pop %v370
    %v372 = vmul.f32 1.0, %v371
    %v373 = vlaneseq
    %v374 = vshrl.u32 %v373, 7
    %v375 = vsub.s32 0, %v374
    %v376 = vrot.slane %v372, %v375
    %378 = vbcast.lane.b32.xlu0 %v376, 256
    %v379 = vpop.permute.xlu0 %378
    %s381 = sor.u32 256, 8
    %382 = vbcast.lane.b32.xlu0 %v376, %s381
    %v383 = vpop.permute.xlu0 %382
    %s385 = sor.u32 256, 16
    %386 = vbcast.lane.b32.xlu0 %v376, %s385
    %v387 = vpop.permute.xlu0 %386
    %s389 = sor.u32 256, 24
    %390 = vbcast.lane.b32.xlu0 %v376, %s389
    %v391 = vpop.permute.xlu0 %390
    %v392 = vlaneseq
    %v393 = vshrl.u32 %v392, 7
    %v394 = vsub.s32 1, %v393
    %v395 = vrot.slane %v372, %v394
    %397 = vbcast.lane.b32.xlu0 %v395, 256
    %v398 = vpop.permute.xlu0 %397
    %s400 = sor.u32 256, 8
    %401 = vbcast.lane.b32.xlu0 %v395, %s400
    %v402 = vpop.permute.xlu0 %401
    %s404 = sor.u32 256, 16
    %405 = vbcast.lane.b32.xlu0 %v395, %s404
    %v406 = vpop.permute.xlu0 %405
    %s408 = sor.u32 256, 24
    %409 = vbcast.lane.b32.xlu0 %v395, %s408
    %v410 = vpop.permute.xlu0 %409
    %v411 = vmul.f32 %v29, %v379
    %v412 = vmul.f32 %v30, %v379
    %v413 = vmul.f32 %v31, %v383
    %v414 = vmul.f32 %v32, %v383
    %v415 = vmul.f32 %v33, %v387
    %v416 = vmul.f32 %v34, %v387
    %v417 = vmul.f32 %v35, %v391
    %v418 = vmul.f32 %v36, %v391
    %v419 = vmul.f32 %v37, %v398
    %v420 = vmul.f32 %v38, %v398
    %v421 = vmul.f32 %v39, %v402
    %v422 = vmul.f32 %v40, %v402
    %v423 = vmul.f32 %v41, %v406
    %v424 = vmul.f32 %v42, %v406
    %v425 = vmul.f32 %v43, %v410
    %v426 = vmul.f32 %v44, %v410
    %427 = vst [vmem:[#allocation5] sm:$0xff] %v411
    %428 = vst [vmem:[#allocation5 + $0x8] sm:$0xff] %v412
    %429 = vst [vmem:[#allocation5 + $0x10] sm:$0xff] %v413
    %430 = vst [vmem:[#allocation5 + $0x18] sm:$0xff] %v414
    %431 = vst [vmem:[#allocation5 + $0x20] sm:$0xff] %v415
    %432 = vst [vmem:[#allocation5 + $0x28] sm:$0xff] %v416
    %433 = vst [vmem:[#allocation5 + $0x30] sm:$0xff] %v417
    %434 = vst [vmem:[#allocation5 + $0x38] sm:$0xff] %v418
    %435 = vst [vmem:[#allocation5 + $0x40] sm:$0xff] %v419
    %436 = vst [vmem:[#allocation5 + $0x48] sm:$0xff] %v420
    %437 = vst [vmem:[#allocation5 + $0x50] sm:$0xff] %v421
    %438 = vst [vmem:[#allocation5 + $0x58] sm:$0xff] %v422
    %439 = vst [vmem:[#allocation5 + $0x60] sm:$0xff] %v423
    %440 = vst [vmem:[#allocation5 + $0x68] sm:$0xff] %v424
    %441 = vst [vmem:[#allocation5 + $0x70] sm:$0xff] %v425
    %442 = vst [vmem:[#allocation5 + $0x78] sm:$0xff] %v426
    // Predicated region
    $region18: #{tpu_custom_call.1} parent=1 // pred_check
      _
    $region19: #{tpu_custom_call.1} parent=1 // pred_check_branch
      %444 = sbr.rel (0) target = $region21
    $region20: #{tpu_custom_call.1} parent=1 // pred_region
      %s446 = ssub.s32 2048, 2048
      %447 = vsyncadd [#allocation4], %s446
      %s448 = sshll.u32 [#allocation5], 4
      %s449 = int_to_ptr.vmem [resolvable:$true] %s448
      %454 = dma.vmem_to_hbm [thread:$0]  %s449, 2048, %s3, [#allocation4], 256, 256, 16
    $region21: #{tpu_custom_call.1} parent=1 // pred_fallthru
      _
    // Predicated region
    $region22: #{tpu_custom_call.1} parent=1 // pred_check
      _
    $region23: #{tpu_custom_call.1} parent=1 // pred_check_branch
      %456 = sbr.rel (0) target = $region25
    $region24: #{tpu_custom_call.1} parent=1 // pred_region
      %457 = dma.done [#allocation4], 2048
    $region25: #{tpu_custom_call.1} parent=1 // pred_fallthru
      _
    %458 = vsyncpa [#allocation3], 1
    %459 = vsyncpa [#allocation4], 1

</llo_original>
